<compile_context>
chip_gen: v7x
topology: tpu7x:2x2x1
jax: 0.10.0
libtpu: 0.0.40
codegen_flags: <defaults>
</compile_context>

<pallas_src>
import functools

import jax
import jax.numpy as jnp
from jax.experimental import pallas as pl
from jax.experimental.pallas import tpu as pltpu


def _dueling_kernel(x_ref, wfc_ref, w1c_ref, w2c_ref, bias_ref, q_ref, *, out_dim):
    # In-kernel cast: x arrives in its native dtype (f32) and is converted to
    # bf16 on the VMEM tile right before the MXU -- no wrapper-side cast pass.
    x = x_ref[...].astype(jnp.bfloat16)        # (tile_b, input_dim)
    bfc = bias_ref[0:1, :]                     # (1, 128) trunk bias
    b1c = bias_ref[1:2, :]                     # (1, 128) fused hidden bias [bv1 | ba1]
    b2c = bias_ref[2:3, :]                     # (1, 128) fused output bias (adv lanes + value lane)

    # Shared trunk: Linear(input_dim -> 128) + ReLU, f32 accumulation.
    h = jnp.dot(x, wfc_ref[...], preferred_element_type=jnp.float32) + bfc
    h = jnp.maximum(h, 0.0)

    # Fused stream hidden layers: [value_hidden | adv_hidden] = ReLU(h @ W1c + b1c).
    hv = jnp.dot(h.astype(jnp.bfloat16), w1c_ref[...],
                 preferred_element_type=jnp.float32) + b1c
    hv = jnp.maximum(hv, 0.0)

    # Fused stream output layers. By construction of W2c / b2c:
    #   lanes [0, out_dim) = advantage, lane 127 = value, all other lanes == 0.
    q_slab = jnp.dot(hv.astype(jnp.bfloat16), w2c_ref[...],
                     preferred_element_type=jnp.float32) + b2c

    value = q_slab[:, 127:128]                       # (tile_b, 1)
    total = jnp.sum(q_slab, axis=1, keepdims=True)   # = sum(adv) + value (pad lanes exact zeros)
    adv_mean = (total - value) * (1.0 / out_dim)

    # q = value + (adv - adv_mean); lanes >= out_dim hold don't-care values and
    # are sliced away by the wrapper (kept so the store stays 128-lane dense).
    q_ref[...] = (q_slab + (value - adv_mean)).astype(q_ref.dtype)


def dueling_dqn_forward(x_nchw, packed, out_dim, *, tile_cap=512, out_dtype=jnp.float32):
    """Dueling DQN forward. x_nchw: (B, C, H, W) float32. Returns (B, out_dim) out_dtype."""
    wfc, w1c, w2c, biases = packed
    input_dim = wfc.shape[0]
    b = x_nchw.shape[0]

    # Row-major flatten (matches torch x.view(B, -1)). No dtype cast here: the
    # kernel casts the loaded tile, so x is read from HBM exactly once.
    x_flat = x_nchw.reshape(b, -1)

    # Batch tiling:
    #   * b <= 8: one full-extent block (always legal), no padding.
    #   * otherwise: at least 2 grid steps (keeps both v7x TensorCores busy via
    #     the "parallel" batch axis) with tile_b = 8-aligned ceil(b / n_tiles),
    #     capped near tile_cap, which keeps grid-edge padding minimal.
    if b <= 8:
        tile_b = b
        b_pad = b
    else:
        n_tiles = max(2, pl.cdiv(b, tile_cap))
        tile_b = pl.cdiv(pl.cdiv(b, n_tiles), 8) * 8
        b_pad = pl.cdiv(b, tile_b) * tile_b
    if b_pad != b:
        x_flat = jnp.pad(x_flat, ((0, b_pad - b), (0, 0)))

    # Scoped-VMEM estimate (double-buffered x + output, resident bf16 weights,
    # packed biases). Raise the limit only when it would exceed v5e's 16 MiB
    # default (e.g. when sweeping tile_cap toward 1024+).
    x_bytes = jnp.dtype(x_flat.dtype).itemsize
    o_bytes = jnp.dtype(out_dtype).itemsize
    vmem_est = (2 * tile_b * input_dim * x_bytes
                + 2 * tile_b * 128 * o_bytes
                + 2 * (input_dim * 128 + 2 * 128 * 128) * 2
                + 2 * 8 * 128 * 4)
    vmem_limit = None
    if vmem_est > 12 * 1024 * 1024:
        vmem_limit = int(min(64 * 1024 * 1024, max(32 * 1024 * 1024, 2 * vmem_est)))

    kernel = functools.partial(_dueling_kernel, out_dim=out_dim)
    q_slab = pl.pallas_call(
        kernel,
        out_shape=jax.ShapeDtypeStruct((b_pad, 128), out_dtype),
        grid=(b_pad // tile_b,),
        in_specs=[
            pl.BlockSpec((tile_b, input_dim), lambda i: (i, 0)),   # x: batch-tiled, f32 in
            pl.BlockSpec((input_dim, 128), lambda i: (0, 0)),      # wfc: VMEM-resident
            pl.BlockSpec((128, 128), lambda i: (0, 0)),            # W1c: VMEM-resident
            pl.BlockSpec((128, 128), lambda i: (0, 0)),            # W2c: VMEM-resident
            pl.BlockSpec((8, 128), lambda i: (0, 0)),              # packed biases
        ],
        out_specs=pl.BlockSpec((tile_b, 128), lambda i: (i, 0)),
        compiler_params=pltpu.CompilerParams(
            dimension_semantics=("parallel",),
            vmem_limit_bytes=vmem_limit),
    )(x_flat, wfc, w1c, w2c, biases)

    return q_slab[:b, :out_dim]


def init_params(key, input_dim, output_dim):
    """Deterministic parameter init (shapes mirror the PyTorch module, stored (in, out))."""
    ks = jax.random.split(key, 10)

    def linear(kw, kb, fan_in, fan_out):
        bound = 1.0 / jnp.sqrt(jnp.float32(fan_in))
        w = jax.random.uniform(kw, (fan_in, fan_out), jnp.float32, -bound, bound)
        b = jax.random.uniform(kb, (1, fan_out), jnp.float32, -bound, bound)
        return w, b

    wfc, bfc = linear(ks[0], ks[1], input_dim, 128)
    wv1, bv1 = linear(ks[2], ks[3], 128, 64)
    wv2, bv2 = linear(ks[4], ks[5], 64, 1)
    wa1, ba1 = linear(ks[6], ks[7], 128, 64)
    wa2, ba2 = linear(ks[8], ks[9], 64, output_dim)
    return (wfc, bfc, wv1, bv1, wv2, bv2, wa1, ba1, wa2, ba2)


def pack_params(params, output_dim):
    """One-time host-side packing: fuse the two streams and collapse biases."""
    # The dueling-mean trick needs lanes [out_dim, 127) of W2c/b2c to be exactly
    # zero and the value lane to be 127; keep this assert if pack_params changes.
    assert output_dim <= 127, "advantage lanes [0,out_dim) must not collide with value lane 127"
    (wfc, bfc, wv1, bv1, wv2, bv2, wa1, ba1, wa2, ba2) = params

    # Fused stream-hidden weights/bias: columns 0:64 -> value stream, 64:128 -> advantage stream.
    w1c = jnp.concatenate([wv1, wa1], axis=1)                      # (128, 128)
    b1c = jnp.concatenate([bv1, ba1], axis=1)                      # (1, 128)

    # Fused stream-output weights/bias: advantage in lanes [0, out_dim), value in lane 127.
    w2c = jnp.zeros((128, 128), jnp.float32)
    w2c = w2c.at[64:128, 0:output_dim].set(wa2)
    w2c = w2c.at[0:64, 127:128].set(wv2)
    b2c = jnp.zeros((1, 128), jnp.float32)
    b2c = b2c.at[0, 0:output_dim].set(ba2[0])
    b2c = b2c.at[0, 127].set(bv2[0, 0])

    biases = jnp.zeros((8, 128), jnp.float32)                      # (8,128)-aligned bias pack
    biases = biases.at[0].set(bfc[0])
    biases = biases.at[1].set(b1c[0])
    biases = biases.at[2].set(b2c[0])

    return (wfc.astype(jnp.bfloat16),
            w1c.astype(jnp.bfloat16),
            w2c.astype(jnp.bfloat16),
            biases)


def reference_forward(x_nchw, params, output_dim):
    """Plain-JAX reference mirroring the kernel's math (bf16 weights, f32 accumulation)."""
    (wfc, bfc, wv1, bv1, wv2, bv2, wa1, ba1, wa2, ba2) = params
    x = x_nchw.reshape(x_nchw.shape[0], -1).astype(jnp.bfloat16)
    wfc_b, wv1_b, wv2_b, wa1_b, wa2_b = (w.astype(jnp.bfloat16)
                                         for w in (wfc, wv1, wv2, wa1, wa2))
    h = jnp.maximum(jnp.dot(x, wfc_b, preferred_element_type=jnp.float32) + bfc, 0.0)
    h16 = h.astype(jnp.bfloat16)
    vh = jnp.maximum(jnp.dot(h16, wv1_b, preferred_element_type=jnp.float32) + bv1, 0.0)
    ah = jnp.maximum(jnp.dot(h16, wa1_b, preferred_element_type=jnp.float32) + ba1, 0.0)
    value = jnp.dot(vh.astype(jnp.bfloat16), wv2_b, preferred_element_type=jnp.float32) + bv2
    adv = jnp.dot(ah.astype(jnp.bfloat16), wa2_b, preferred_element_type=jnp.float32) + ba2
    return value + (adv - adv.mean(axis=1, keepdims=True))


if __name__ == "__main__":
    key = jax.random.PRNGKey(0)
    k_x, k_p, k_x2 = jax.random.split(key, 3)

    # Small shapes consistent with the module: input_shape = (C, H, W) = (4, 16, 16).
    B, C, H, W = 2, 4, 16, 16
    output_dim = 8
    input_dim = C * H * W  # 1024

    x = jax.random.normal(k_x, (B, C, H, W), jnp.float32)
    params = init_params(k_p, input_dim, output_dim)
    packed = pack_params(params, output_dim)

    q = jax.block_until_ready(dueling_dqn_forward(x, packed, output_dim))
    q_ref = reference_forward(x, params, output_dim)
    assert q.shape == (B, output_dim)
    assert jnp.allclose(q, q_ref, atol=1e-3, rtol=1e-3), "mismatch vs JAX reference (B=2)"

    # Second check exercises the multi-step grid (>=2 tiles, v7x path) and the
    # ragged-batch padding heuristic.
    B2 = 100
    x2 = jax.random.normal(k_x2, (B2, C, H, W), jnp.float32)
    q2 = jax.block_until_ready(dueling_dqn_forward(x2, packed, output_dim))
    q2_ref = reference_forward(x2, params, output_dim)
    assert q2.shape == (B2, output_dim)
    assert jnp.allclose(q2, q2_ref, atol=1e-3, rtol=1e-3), "mismatch vs JAX reference (B=100)"

    print("KERNEL_OK")
</pallas_src>

<mosaic_0001>
module attributes {stable_mosaic.version = 11 : i64} {
  func.func @_dueling_kernel(%arg0: i32, %arg1: memref<2x1024xf32, #tpu.memory_space<vmem>>, %arg2: memref<1024x128xbf16, #tpu.memory_space<vmem>>, %arg3: memref<128x128xbf16, #tpu.memory_space<vmem>>, %arg4: memref<128x128xbf16, #tpu.memory_space<vmem>>, %arg5: memref<8x128xf32, #tpu.memory_space<vmem>>, %arg6: memref<2x128xf32, #tpu.memory_space<vmem>>) attributes {dimension_semantics = [#tpu.dimension_semantics<parallel>], iteration_bounds = array<i64: 1>, scalar_prefetch = 0 : i64, scratch_operands = 0 : i64, tpu.core_type = #tpu.core_type<tc>, window_params = [{transform_indices = @transform_0, window_bounds = array<i64: 2, 1024>}, {pipeline_mode = #tpu.pipeline_mode<synchronous>, transform_indices = @transform_1, window_bounds = array<i64: 1024, 128>}, {pipeline_mode = #tpu.pipeline_mode<synchronous>, transform_indices = @transform_2, window_bounds = array<i64: 128, 128>}, {pipeline_mode = #tpu.pipeline_mode<synchronous>, transform_indices = @transform_3, window_bounds = array<i64: 128, 128>}, {pipeline_mode = #tpu.pipeline_mode<synchronous>, transform_indices = @transform_4, window_bounds = array<i64: 8, 128>}, {transform_indices = @transform_5, window_bounds = array<i64: 2, 128>}]} {
    %c0 = arith.constant 0 : index
    %c0_0 = arith.constant 0 : index
    %0 = vector.load %arg1[%c0, %c0_0] : memref<2x1024xf32, #tpu.memory_space<vmem>>, vector<2x1024xf32>
    %1 = arith.truncf %0 : vector<2x1024xf32> to vector<2x1024xbf16>
    %c0_1 = arith.constant 0 : index
    %c0_2 = arith.constant 0 : index
    %2 = vector.load %arg5[%c0_1, %c0_2] : memref<8x128xf32, #tpu.memory_space<vmem>>, vector<1x128xf32>
    %c1 = arith.constant 1 : index
    %c0_3 = arith.constant 0 : index
    %3 = vector.load %arg5[%c1, %c0_3] : memref<8x128xf32, #tpu.memory_space<vmem>>, vector<1x128xf32>
    %c2 = arith.constant 2 : index
    %c0_4 = arith.constant 0 : index
    %4 = vector.load %arg5[%c2, %c0_4] : memref<8x128xf32, #tpu.memory_space<vmem>>, vector<1x128xf32>
    %c0_5 = arith.constant 0 : index
    %c0_6 = arith.constant 0 : index
    %5 = vector.load %arg2[%c0_5, %c0_6] : memref<1024x128xbf16, #tpu.memory_space<vmem>>, vector<1024x128xbf16>
    %cst = arith.constant dense<0.000000e+00> : vector<2x128xf32>
    %6 = tpu.matmul %1, %5, %cst {dimension_numbers = #tpu.dot_dimension_numbers<[1], [0], [0], [1], [0, 0, 1, 1], [], []>} : vector<2x1024xbf16>, vector<1024x128xbf16>, vector<2x128xf32> -> vector<2x128xf32>
    %7 = vector.broadcast %2 : vector<1x128xf32> to vector<2x128xf32>
    %8 = arith.addf %6, %7 : vector<2x128xf32>
    %cst_7 = arith.constant 0.000000e+00 : f32
    %9 = vector.broadcast %cst_7 : f32 to vector<2x128xf32>
    %10 = arith.maximumf %8, %9 : vector<2x128xf32>
    %11 = arith.truncf %10 : vector<2x128xf32> to vector<2x128xbf16>
    %c0_8 = arith.constant 0 : index
    %c0_9 = arith.constant 0 : index
    %12 = vector.load %arg3[%c0_8, %c0_9] : memref<128x128xbf16, #tpu.memory_space<vmem>>, vector<128x128xbf16>
    %cst_10 = arith.constant dense<0.000000e+00> : vector<2x128xf32>
    %13 = tpu.matmul %11, %12, %cst_10 {dimension_numbers = #tpu.dot_dimension_numbers<[1], [0], [0], [1], [0, 0, 1, 1], [], []>} : vector<2x128xbf16>, vector<128x128xbf16>, vector<2x128xf32> -> vector<2x128xf32>
    %14 = vector.broadcast %3 : vector<1x128xf32> to vector<2x128xf32>
    %15 = arith.addf %13, %14 : vector<2x128xf32>
    %cst_11 = arith.constant 0.000000e+00 : f32
    %16 = vector.broadcast %cst_11 : f32 to vector<2x128xf32>
    %17 = arith.maximumf %15, %16 : vector<2x128xf32>
    %18 = arith.truncf %17 : vector<2x128xf32> to vector<2x128xbf16>
    %c0_12 = arith.constant 0 : index
    %c0_13 = arith.constant 0 : index
    %19 = vector.load %arg4[%c0_12, %c0_13] : memref<128x128xbf16, #tpu.memory_space<vmem>>, vector<128x128xbf16>
    %cst_14 = arith.constant dense<0.000000e+00> : vector<2x128xf32>
    %20 = tpu.matmul %18, %19, %cst_14 {dimension_numbers = #tpu.dot_dimension_numbers<[1], [0], [0], [1], [0, 0, 1, 1], [], []>} : vector<2x128xbf16>, vector<128x128xbf16>, vector<2x128xf32> -> vector<2x128xf32>
    %21 = vector.broadcast %4 : vector<1x128xf32> to vector<2x128xf32>
    %22 = arith.addf %20, %21 : vector<2x128xf32>
    %23 = vector.extract_strided_slice %22 {offsets = [0, 127], sizes = [2, 1], strides = [1, 1]} : vector<2x128xf32> to vector<2x1xf32>
    %cst_15 = arith.constant dense<0.000000e+00> : vector<2xf32>
    %24 = vector.multi_reduction <add>, %22, %cst_15 [1] : vector<2x128xf32> to vector<2xf32>
    %25 = vector.shape_cast %24 : vector<2xf32> to vector<2x1xf32>
    %26 = arith.subf %25, %23 : vector<2x1xf32>
    %cst_16 = arith.constant 1.250000e-01 : f32
    %27 = vector.broadcast %cst_16 : f32 to vector<2x1xf32>
    %28 = arith.mulf %26, %27 : vector<2x1xf32>
    %29 = arith.subf %23, %28 : vector<2x1xf32>
    %30 = vector.broadcast %29 : vector<2x1xf32> to vector<2x128xf32>
    %31 = arith.addf %22, %30 : vector<2x128xf32>
    %c0_17 = arith.constant 0 : index
    %c0_18 = arith.constant 0 : index
    %32 = vector.load %arg6[%c0_17, %c0_18] : memref<2x128xf32, #tpu.memory_space<vmem>>, vector<2x128xf32>
    tpu.vector_store %arg6[%c0_17, %c0_18], %31 {strides = array<i32>} : memref<2x128xf32, #tpu.memory_space<vmem>>, vector<2x128xf32>,
    return
  }
  func.func @transform_0(%arg0: i32) -> (i32, i32) {
    %c0_i32 = arith.constant 0 : i32
    %c0_i32_0 = arith.constant 0 : i32
    return %arg0, %c0_i32 : i32, i32
  }
  func.func @transform_1(%arg0: i32) -> (i32, i32) {
    %c0_i32 = arith.constant 0 : i32
    %c0_i32_0 = arith.constant 0 : i32
    %c0_i32_1 = arith.constant 0 : i32
    return %c0_i32, %c0_i32_0 : i32, i32
  }
  func.func @transform_2(%arg0: i32) -> (i32, i32) {
    %c0_i32 = arith.constant 0 : i32
    %c0_i32_0 = arith.constant 0 : i32
    %c0_i32_1 = arith.constant 0 : i32
    return %c0_i32, %c0_i32_0 : i32, i32
  }
  func.func @transform_3(%arg0: i32) -> (i32, i32) {
    %c0_i32 = arith.constant 0 : i32
    %c0_i32_0 = arith.constant 0 : i32
    %c0_i32_1 = arith.constant 0 : i32
    return %c0_i32, %c0_i32_0 : i32, i32
  }
  func.func @transform_4(%arg0: i32) -> (i32, i32) {
    %c0_i32 = arith.constant 0 : i32
    %c0_i32_0 = arith.constant 0 : i32
    %c0_i32_1 = arith.constant 0 : i32
    return %c0_i32, %c0_i32_0 : i32, i32
  }
  func.func @transform_5(%arg0: i32) -> (i32, i32) {
    %c0_i32 = arith.constant 0 : i32
    %c0_i32_0 = arith.constant 0 : i32
    return %arg0, %c0_i32 : i32, i32
  }
}

</mosaic_0001>

<llo_original>
// kernel: tpu_custom_call.1
$region0: #{tpu_custom_call.1}
  #allocation0 [shape = 'u32[]', space=smem, size = 0x4, offset = 0x4, fixed_abs, tag = 'smem constant byte address 0x4 - core index']
  #allocation1 [shape = 'u32[144,128]{1,0:T(1,128)}', space=vmem, size = 0x12000, scoped, tag = 'internal scratch']
  %s0 = inlined_call_operand.hbm [shape: f32[2,1024], index: 0, kind: input, shape index: {}]
  %s1 = inlined_call_operand.hbm [shape: bf16[1024,128], index: 1, kind: input, shape index: {}]
  %s2 = inlined_call_operand.hbm [shape: bf16[128,128], index: 2, kind: input, shape index: {}]
  %s3 = inlined_call_operand.hbm [shape: bf16[128,128], index: 3, kind: input, shape index: {}]
  %s4 = inlined_call_operand.vmem [shape: f32[8,128], index: 4, kind: input, shape index: {}]
  %s5 = inlined_call_operand.hbm [shape: f32[2,128], index: 5, kind: output, shape index: {}]
  %s6 = sld [smem:[#allocation0]]
  $region46: #{tpu_custom_call.1} parent=0
    _
  %s8 = ssub.s32 1, %s6
  %s9 = scalar_select 0, %s8, %s6
  $region1: #{tpu_custom_call.1} parent=0
    #allocation2 [shape = 'u8[8192]{0}', space=vmem, size = 0x2000, scoped, tag = 'input window, operand 0, single buffered']
    #allocation3 [shape = 's32[1]{0}', space=sflag, size = 0x4, scoped, tag = 'scoped memory for tpu_custom_call.1']
    #allocation4 [shape = 's32[1]{0}', space=sflag, size = 0x4, scoped, tag = 'scoped memory for tpu_custom_call.1']
    #allocation5 [shape = 'u8[262144]{0}', space=vmem, size = 0x40000, scoped, tag = 'input window, operand 1, single buffered']
    #allocation6 [shape = 's32[1]{0}', space=sflag, size = 0x4, scoped, tag = 'scoped memory for tpu_custom_call.1']
    #allocation7 [shape = 'u8[32768]{0}', space=vmem, size = 0x8000, scoped, tag = 'input window, operand 2, single buffered']
    #allocation8 [shape = 'u8[32768]{0}', space=vmem, size = 0x8000, scoped, tag = 'input window, operand 3, single buffered']
    #allocation9 [shape = 's32[1]{0}', space=sflag, size = 0x4, scoped, tag = 'scoped memory for tpu_custom_call.1']
    #allocation10 [shape = 'u8[1024]{0}', space=vmem, size = 0x400, scoped, tag = 'output window, operand 0, single buffered']
    %10 = vsyncpa [#allocation3], 0
    %11 = vsyncpa [#allocation6], 0
    %12 = vsyncpa [#allocation9], 0
    %13 = vsyncpa [#allocation4], 0
    // Predicated region
    $region2: #{tpu_custom_call.1} parent=1 // pred_check
      _
    $region3: #{tpu_custom_call.1} parent=1 // pred_check_branch
      %15 = sbr.rel (0) target = $region5
    $region4: #{tpu_custom_call.1} parent=1 // pred_region
      %s17 = ssub.s32 256, 256
      %18 = vsyncadd [#allocation3], %s17
      %s20 = sshll.u32 [#allocation2], 4
      %s21 = int_to_ptr.vmem [resolvable:$true] %s20
      %23 = dma.hbm_to_vmem [thread:$0]  %s0, 256, %s21, [#allocation3]
    $region5: #{tpu_custom_call.1} parent=1 // pred_fallthru
      _
    // Predicated region
    $region6: #{tpu_custom_call.1} parent=1 // pred_check
      _
    $region7: #{tpu_custom_call.1} parent=1 // pred_check_branch
      %25 = sbr.rel (0) target = $region9
    $region8: #{tpu_custom_call.1} parent=1 // pred_region
      %s27 = ssub.s32 8192, 8192
      %28 = vsyncadd [#allocation6], %s27
      %s29 = sshll.u32 [#allocation5], 4
      %s30 = int_to_ptr.vmem [resolvable:$true] %s29
      %35 = dma.hbm_to_vmem [thread:$0]  %s1, 8192, %s30, [#allocation6], 64, 64, 4
    $region9: #{tpu_custom_call.1} parent=1 // pred_fallthru
      _
    // Predicated region
    $region10: #{tpu_custom_call.1} parent=1 // pred_check
      _
    $region11: #{tpu_custom_call.1} parent=1 // pred_check_branch
      %37 = sbr.rel (0) target = $region13
    $region12: #{tpu_custom_call.1} parent=1 // pred_region
      %s39 = ssub.s32 1024, 1024
      %40 = vsyncadd [#allocation6], %s39
      %s41 = sshll.u32 [#allocation7], 4
      %s42 = int_to_ptr.vmem [resolvable:$true] %s41
      %47 = dma.hbm_to_vmem [thread:$0]  %s2, 1024, %s42, [#allocation6], 64, 64, 4
    $region13: #{tpu_custom_call.1} parent=1 // pred_fallthru
      _
    // Predicated region
    $region14: #{tpu_custom_call.1} parent=1 // pred_check
      _
    $region15: #{tpu_custom_call.1} parent=1 // pred_check_branch
      %49 = sbr.rel (0) target = $region17
    $region16: #{tpu_custom_call.1} parent=1 // pred_region
      %s51 = ssub.s32 1024, 1024
      %52 = vsyncadd [#allocation9], %s51
      %s53 = sshll.u32 [#allocation8], 4
      %s54 = int_to_ptr.vmem [resolvable:$true] %s53
      %59 = dma.hbm_to_vmem [thread:$0]  %s3, 1024, %s54, [#allocation9], 64, 64, 4
    $region17: #{tpu_custom_call.1} parent=1 // pred_fallthru
      _
    // Predicated region
    $region18: #{tpu_custom_call.1} parent=1 // pred_check
      _
    $region19: #{tpu_custom_call.1} parent=1 // pred_check_branch
      %61 = sbr.rel (0) target = $region21
    $region20: #{tpu_custom_call.1} parent=1 // pred_region
      _
    $region21: #{tpu_custom_call.1} parent=1 // pred_fallthru
      _
    // Predicated region
    $region22: #{tpu_custom_call.1} parent=1 // pred_check
      _
    $region23: #{tpu_custom_call.1} parent=1 // pred_check_branch
      %63 = sbr.rel (0) target = $region25
    $region24: #{tpu_custom_call.1} parent=1 // pred_region
      %64 = dma.done [#allocation3], 256
    $region25: #{tpu_custom_call.1} parent=1 // pred_fallthru
      _
    // Predicated region
    $region26: #{tpu_custom_call.1} parent=1 // pred_check
      _
    $region27: #{tpu_custom_call.1} parent=1 // pred_check_branch
      %66 = sbr.rel (0) target = $region29
    $region28: #{tpu_custom_call.1} parent=1 // pred_region
      %67 = dma.done [#allocation6], 8192
    $region29: #{tpu_custom_call.1} parent=1 // pred_fallthru
      _
    // Predicated region
    $region30: #{tpu_custom_call.1} parent=1 // pred_check
      _
    $region31: #{tpu_custom_call.1} parent=1 // pred_check_branch
      %69 = sbr.rel (0) target = $region33
    $region32: #{tpu_custom_call.1} parent=1 // pred_region
      %70 = dma.done [#allocation6], 1024
    $region33: #{tpu_custom_call.1} parent=1 // pred_fallthru
      _
    // Predicated region
    $region34: #{tpu_custom_call.1} parent=1 // pred_check
      _
    $region35: #{tpu_custom_call.1} parent=1 // pred_check_branch
      %72 = sbr.rel (0) target = $region37
    $region36: #{tpu_custom_call.1} parent=1 // pred_region
      %73 = dma.done [#allocation9], 1024
    $region37: #{tpu_custom_call.1} parent=1 // pred_fallthru
      _
    %v75 = vld [vmem:[#allocation2] sm:$0xff]
    %v76 = vld [vmem:[#allocation2 + $0x8] sm:$0xff]
    %v79 = vcombine.high %v75, %v75
    %v81 = vunpack.c.l.s4 1983009808
    %v82 = vunpack.c.0.s8 %v81
    %v83 = vlaneseq
    %v84 = vshrl.u32 %v83, 7
    %v85 = vsub.s32 %v82, %v84
    %v86 = vrot.slane %v75, %v85
    %v88 = vunpack.c.l.s4 1983009808
    %v89 = vunpack.c.0.s8 %v88
    %v90 = vlaneseq
    %v91 = vshrl.u32 %v90, 7
    %v92 = vsub.s32 %v89, %v91
    %v93 = vrot.slane %v79, %v92
    %v94 = vcombine.high %v86, %v86
    %v95 = vcombine.high %v93, %v93
    %v96 = vcombine.high %v76, %v76
    %v98 = vunpack.c.l.s4 1983009808
    %v99 = vunpack.c.0.s8 %v98
    %v100 = vlaneseq
    %v101 = vshrl.u32 %v100, 7
    %v102 = vsub.s32 %v99, %v101
    %v103 = vrot.slane %v76, %v102
    %v105 = vunpack.c.l.s4 1983009808
    %v106 = vunpack.c.0.s8 %v105
    %v107 = vlaneseq
    %v108 = vshrl.u32 %v107, 7
    %v109 = vsub.s32 %v106, %v108
    %v110 = vrot.slane %v96, %v109
    %v111 = vcombine.high %v103, %v103
    %v112 = vcombine.high %v110, %v110
    %v121 = vpack.c.bf16 %v86, %v86
    %v122 = vpack.c.bf16 %v94, %v94
    %v123 = vpack.c.bf16 %v93, %v93
    %v124 = vpack.c.bf16 %v95, %v95
    %v125 = vpack.c.bf16 %v103, %v103
    %v126 = vpack.c.bf16 %v111, %v111
    %v127 = vpack.c.bf16 %v110, %v110
    %v128 = vpack.c.bf16 %v112, %v112
    %v129 = vld [vmem:[%s4] sm:$0x1]
    %v130 = vld [vmem:[%s4 + $0x1] sm:$0x1]
    %v131 = vld [vmem:[%s4 + $0x2] sm:$0x1]
    %v132 = vld [vmem:[#allocation5] sm:$0xf]
    %v133 = vld [vmem:[#allocation5 + $0x4] sm:$0xf]
    %v134 = vld [vmem:[#allocation5 + $0x8] sm:$0xf]
    %v135 = vld [vmem:[#allocation5 + $0xc] sm:$0xf]
    %v136 = vld [vmem:[#allocation5 + $0x10] sm:$0xf]
    %v137 = vld [vmem:[#allocation5 + $0x14] sm:$0xf]
    %v138 = vld [vmem:[#allocation5 + $0x18] sm:$0xf]
    %v139 = vld [vmem:[#allocation5 + $0x1c] sm:$0xf]
    %v140 = vld [vmem:[#allocation5 + $0x20] sm:$0xf]
    %v141 = vld [vmem:[#allocation5 + $0x24] sm:$0xf]
    %v142 = vld [vmem:[#allocation5 + $0x28] sm:$0xf]
    %v143 = vld [vmem:[#allocation5 + $0x2c] sm:$0xf]
    %v144 = vld [vmem:[#allocation5 + $0x30] sm:$0xf]
    %v145 = vld [vmem:[#allocation5 + $0x34] sm:$0xf]
    %v146 = vld [vmem:[#allocation5 + $0x38] sm:$0xf]
    %v147 = vld [vmem:[#allocation5 + $0x3c] sm:$0xf]
    %v148 = vld [vmem:[#allocation5 + $0x40] sm:$0xf]
    %v149 = vld [vmem:[#allocation5 + $0x44] sm:$0xf]
    %v150 = vld [vmem:[#allocation5 + $0x48] sm:$0xf]
    %v151 = vld [vmem:[#allocation5 + $0x4c] sm:$0xf]
    %v152 = vld [vmem:[#allocation5 + $0x50] sm:$0xf]
    %v153 = vld [vmem:[#allocation5 + $0x54] sm:$0xf]
    %v154 = vld [vmem:[#allocation5 + $0x58] sm:$0xf]
    %v155 = vld [vmem:[#allocation5 + $0x5c] sm:$0xf]
    %v156 = vld [vmem:[#allocation5 + $0x60] sm:$0xf]
    %v157 = vld [vmem:[#allocation5 + $0x64] sm:$0xf]
    %v158 = vld [vmem:[#allocation5 + $0x68] sm:$0xf]
    %v159 = vld [vmem:[#allocation5 + $0x6c] sm:$0xf]
    %v160 = vld [vmem:[#allocation5 + $0x70] sm:$0xf]
    %v161 = vld [vmem:[#allocation5 + $0x74] sm:$0xf]
    %v162 = vld [vmem:[#allocation5 + $0x78] sm:$0xf]
    %v163 = vld [vmem:[#allocation5 + $0x7c] sm:$0xf]
    %v164 = vld [vmem:[#allocation5 + $0x80] sm:$0xf]
    %v165 = vld [vmem:[#allocation5 + $0x84] sm:$0xf]
    %v166 = vld [vmem:[#allocation5 + $0x88] sm:$0xf]
    %v167 = vld [vmem:[#allocation5 + $0x8c] sm:$0xf]
    %v168 = vld [vmem:[#allocation5 + $0x90] sm:$0xf]
    %v169 = vld [vmem:[#allocation5 + $0x94] sm:$0xf]
    %v170 = vld [vmem:[#allocation5 + $0x98] sm:$0xf]
    %v171 = vld [vmem:[#allocation5 + $0x9c] sm:$0xf]
    %v172 = vld [vmem:[#allocation5 + $0xa0] sm:$0xf]
    %v173 = vld [vmem:[#allocation5 + $0xa4] sm:$0xf]
    %v174 = vld [vmem:[#allocation5 + $0xa8] sm:$0xf]
    %v175 = vld [vmem:[#allocation5 + $0xac] sm:$0xf]
    %v176 = vld [vmem:[#allocation5 + $0xb0] sm:$0xf]
    %v177 = vld [vmem:[#allocation5 + $0xb4] sm:$0xf]
    %v178 = vld [vmem:[#allocation5 + $0xb8] sm:$0xf]
    %v179 = vld [vmem:[#allocation5 + $0xbc] sm:$0xf]
    %v180 = vld [vmem:[#allocation5 + $0xc0] sm:$0xf]
    %v181 = vld [vmem:[#allocation5 + $0xc4] sm:$0xf]
    %v182 = vld [vmem:[#allocation5 + $0xc8] sm:$0xf]
    %v183 = vld [vmem:[#allocation5 + $0xcc] sm:$0xf]
    %v184 = vld [vmem:[#allocation5 + $0xd0] sm:$0xf]
    %v185 = vld [vmem:[#allocation5 + $0xd4] sm:$0xf]
    %v186 = vld [vmem:[#allocation5 + $0xd8] sm:$0xf]
    %v187 = vld [vmem:[#allocation5 + $0xdc] sm:$0xf]
    %v188 = vld [vmem:[#allocation5 + $0xe0] sm:$0xf]
    %v189 = vld [vmem:[#allocation5 + $0xe4] sm:$0xf]
    %v190 = vld [vmem:[#allocation5 + $0xe8] sm:$0xf]
    %v191 = vld [vmem:[#allocation5 + $0xec] sm:$0xf]
    %v192 = vld [vmem:[#allocation5 + $0xf0] sm:$0xf]
    %v193 = vld [vmem:[#allocation5 + $0xf4] sm:$0xf]
    %v194 = vld [vmem:[#allocation5 + $0xf8] sm:$0xf]
    %v195 = vld [vmem:[#allocation5 + $0xfc] sm:$0xf]
    %v196 = vld [vmem:[#allocation5 + $0x100] sm:$0xf]
    %v197 = vld [vmem:[#allocation5 + $0x104] sm:$0xf]
    %v198 = vld [vmem:[#allocation5 + $0x108] sm:$0xf]
    %v199 = vld [vmem:[#allocation5 + $0x10c] sm:$0xf]
    %v200 = vld [vmem:[#allocation5 + $0x110] sm:$0xf]
    %v201 = vld [vmem:[#allocation5 + $0x114] sm:$0xf]
    %v202 = vld [vmem:[#allocation5 + $0x118] sm:$0xf]
    %v203 = vld [vmem:[#allocation5 + $0x11c] sm:$0xf]
    %v204 = vld [vmem:[#allocation5 + $0x120] sm:$0xf]
    %v205 = vld [vmem:[#allocation5 + $0x124] sm:$0xf]
    %v206 = vld [vmem:[#allocation5 + $0x128] sm:$0xf]
    %v207 = vld [vmem:[#allocation5 + $0x12c] sm:$0xf]
    %v208 = vld [vmem:[#allocation5 + $0x130] sm:$0xf]
    %v209 = vld [vmem:[#allocation5 + $0x134] sm:$0xf]
    %v210 = vld [vmem:[#allocation5 + $0x138] sm:$0xf]
    %v211 = vld [vmem:[#allocation5 + $0x13c] sm:$0xf]
    %v212 = vld [vmem:[#allocation5 + $0x140] sm:$0xf]
    %v213 = vld [vmem:[#allocation5 + $0x144] sm:$0xf]
    %v214 = vld [vmem:[#allocation5 + $0x148] sm:$0xf]
    %v215 = vld [vmem:[#allocation5 + $0x14c] sm:$0xf]
    %v216 = vld [vmem:[#allocation5 + $0x150] sm:$0xf]
    %v217 = vld [vmem:[#allocation5 + $0x154] sm:$0xf]
    %v218 = vld [vmem:[#allocation5 + $0x158] sm:$0xf]
    %v219 = vld [vmem:[#allocation5 + $0x15c] sm:$0xf]
    %v220 = vld [vmem:[#allocation5 + $0x160] sm:$0xf]
    %v221 = vld [vmem:[#allocation5 + $0x164] sm:$0xf]
    %v222 = vld [vmem:[#allocation5 + $0x168] sm:$0xf]
    %v223 = vld [vmem:[#allocation5 + $0x16c] sm:$0xf]
    %v224 = vld [vmem:[#allocation5 + $0x170] sm:$0xf]
    %v225 = vld [vmem:[#allocation5 + $0x174] sm:$0xf]
    %v226 = vld [vmem:[#allocation5 + $0x178] sm:$0xf]
    %v227 = vld [vmem:[#allocation5 + $0x17c] sm:$0xf]
    %v228 = vld [vmem:[#allocation5 + $0x180] sm:$0xf]
    %v229 = vld [vmem:[#allocation5 + $0x184] sm:$0xf]
    %v230 = vld [vmem:[#allocation5 + $0x188] sm:$0xf]
    %v231 = vld [vmem:[#allocation5 + $0x18c] sm:$0xf]
    %v232 = vld [vmem:[#allocation5 + $0x190] sm:$0xf]
    %v233 = vld [vmem:[#allocation5 + $0x194] sm:$0xf]
    %v234 = vld [vmem:[#allocation5 + $0x198] sm:$0xf]
    %v235 = vld [vmem:[#allocation5 + $0x19c] sm:$0xf]
    %v236 = vld [vmem:[#allocation5 + $0x1a0] sm:$0xf]
    %v237 = vld [vmem:[#allocation5 + $0x1a4] sm:$0xf]
    %v238 = vld [vmem:[#allocation5 + $0x1a8] sm:$0xf]
    %v239 = vld [vmem:[#allocation5 + $0x1ac] sm:$0xf]
    %v240 = vld [vmem:[#allocation5 + $0x1b0] sm:$0xf]
    %v241 = vld [vmem:[#allocation5 + $0x1b4] sm:$0xf]
    %v242 = vld [vmem:[#allocation5 + $0x1b8] sm:$0xf]
    %v243 = vld [vmem:[#allocation5 + $0x1bc] sm:$0xf]
    %v244 = vld [vmem:[#allocation5 + $0x1c0] sm:$0xf]
    %v245 = vld [vmem:[#allocation5 + $0x1c4] sm:$0xf]
    %v246 = vld [vmem:[#allocation5 + $0x1c8] sm:$0xf]
    %v247 = vld [vmem:[#allocation5 + $0x1cc] sm:$0xf]
    %v248 = vld [vmem:[#allocation5 + $0x1d0] sm:$0xf]
    %v249 = vld [vmem:[#allocation5 + $0x1d4] sm:$0xf]
    %v250 = vld [vmem:[#allocation5 + $0x1d8] sm:$0xf]
    %v251 = vld [vmem:[#allocation5 + $0x1dc] sm:$0xf]
    %v252 = vld [vmem:[#allocation5 + $0x1e0] sm:$0xf]
    %v253 = vld [vmem:[#allocation5 + $0x1e4] sm:$0xf]
    %v254 = vld [vmem:[#allocation5 + $0x1e8] sm:$0xf]
    %v255 = vld [vmem:[#allocation5 + $0x1ec] sm:$0xf]
    %v256 = vld [vmem:[#allocation5 + $0x1f0] sm:$0xf]
    %v257 = vld [vmem:[#allocation5 + $0x1f4] sm:$0xf]
    %v258 = vld [vmem:[#allocation5 + $0x1f8] sm:$0xf]
    %v259 = vld [vmem:[#allocation5 + $0x1fc] sm:$0xf]
    %v260 = vlaneseq
    %v261 = vshrl.u32 %v260, 7
    %v262 = vsub.s32 0, %v261
    %v263 = vrot.slane %v129, %v262
    %v392 = vunpack.c.l.b16 %v132
    %v393 = vunpack.c.l.b16 %v133
    %v394 = vunpack.c.l.b16 %v134
    %v395 = vunpack.c.l.b16 %v135
    %v396 = vunpack.c.l.b16 %v136
    %v397 = vunpack.c.l.b16 %v137
    %v398 = vunpack.c.l.b16 %v138
    %v399 = vunpack.c.l.b16 %v139
    %v400 = vunpack.c.l.b16 %v140
    %v401 = vunpack.c.l.b16 %v141
    %v402 = vunpack.c.l.b16 %v142
    %v403 = vunpack.c.l.b16 %v143
    %v404 = vunpack.c.l.b16 %v144
    %v405 = vunpack.c.l.b16 %v145
    %v406 = vunpack.c.l.b16 %v146
    %v407 = vunpack.c.l.b16 %v147
    %v408 = vunpack.c.l.b16 %v148
    %v409 = vunpack.c.l.b16 %v149
    %v410 = vunpack.c.l.b16 %v150
    %v411 = vunpack.c.l.b16 %v151
    %v412 = vunpack.c.l.b16 %v152
    %v413 = vunpack.c.l.b16 %v153
    %v414 = vunpack.c.l.b16 %v154
    %v415 = vunpack.c.l.b16 %v155
    %v416 = vunpack.c.l.b16 %v156
    %v417 = vunpack.c.l.b16 %v157
    %v418 = vunpack.c.l.b16 %v158
    %v419 = vunpack.c.l.b16 %v159
    %v420 = vunpack.c.l.b16 %v160
    %v421 = vunpack.c.l.b16 %v161
    %v422 = vunpack.c.l.b16 %v162
    %v423 = vunpack.c.l.b16 %v163
    %v424 = vunpack.c.l.b16 %v164
    %v425 = vunpack.c.l.b16 %v165
    %v426 = vunpack.c.l.b16 %v166
    %v427 = vunpack.c.l.b16 %v167
    %v428 = vunpack.c.l.b16 %v168
    %v429 = vunpack.c.l.b16 %v169
    %v430 = vunpack.c.l.b16 %v170
    %v431 = vunpack.c.l.b16 %v171
    %v432 = vunpack.c.l.b16 %v172
    %v433 = vunpack.c.l.b16 %v173
    %v434 = vunpack.c.l.b16 %v174
    %v435 = vunpack.c.l.b16 %v175
    %v436 = vunpack.c.l.b16 %v176
    %v437 = vunpack.c.l.b16 %v177
    %v438 = vunpack.c.l.b16 %v178
    %v439 = vunpack.c.l.b16 %v179
    %v440 = vunpack.c.l.b16 %v180
    %v441 = vunpack.c.l.b16 %v181
    %v442 = vunpack.c.l.b16 %v182
    %v443 = vunpack.c.l.b16 %v183
    %v444 = vunpack.c.l.b16 %v184
    %v445 = vunpack.c.l.b16 %v185
    %v446 = vunpack.c.l.b16 %v186
    %v447 = vunpack.c.l.b16 %v187
    %v448 = vunpack.c.l.b16 %v188
    %v449 = vunpack.c.l.b16 %v189
    %v450 = vunpack.c.l.b16 %v190
    %v451 = vunpack.c.l.b16 %v191
    %v452 = vunpack.c.l.b16 %v192
    %v453 = vunpack.c.l.b16 %v193
    %v454 = vunpack.c.l.b16 %v194
    %v455 = vunpack.c.l.b16 %v195
    %v456 = vunpack.c.l.b16 %v196
    %v457 = vunpack.c.l.b16 %v197
    %v458 = vunpack.c.l.b16 %v198
    %v459 = vunpack.c.l.b16 %v199
    %v460 = vunpack.c.l.b16 %v200
    %v461 = vunpack.c.l.b16 %v201
    %v462 = vunpack.c.l.b16 %v202
    %v463 = vunpack.c.l.b16 %v203
    %v464 = vunpack.c.l.b16 %v204
    %v465 = vunpack.c.l.b16 %v205
    %v466 = vunpack.c.l.b16 %v206
    %v467 = vunpack.c.l.b16 %v207
    %v468 = vunpack.c.l.b16 %v208
    %v469 = vunpack.c.l.b16 %v209
    %v470 = vunpack.c.l.b16 %v210
    %v471 = vunpack.c.l.b16 %v211
    %v472 = vunpack.c.l.b16 %v212
    %v473 = vunpack.c.l.b16 %v213
    %v474 = vunpack.c.l.b16 %v214
    %v475 = vunpack.c.l.b16 %v215
    %v476 = vunpack.c.l.b16 %v216
    %v477 = vunpack.c.l.b16 %v217
    %v478 = vunpack.c.l.b16 %v218
    %v479 = vunpack.c.l.b16 %v219
    %v480 = vunpack.c.l.b16 %v220
    %v481 = vunpack.c.l.b16 %v221
    %v482 = vunpack.c.l.b16 %v222
    %v483 = vunpack.c.l.b16 %v223
    %v484 = vunpack.c.l.b16 %v224
    %v485 = vunpack.c.l.b16 %v225
    %v486 = vunpack.c.l.b16 %v226
    %v487 = vunpack.c.l.b16 %v227
    %v488 = vunpack.c.l.b16 %v228
    %v489 = vunpack.c.l.b16 %v229
    %v490 = vunpack.c.l.b16 %v230
    %v491 = vunpack.c.l.b16 %v231
    %v492 = vunpack.c.l.b16 %v232
    %v493 = vunpack.c.l.b16 %v233
    %v494 = vunpack.c.l.b16 %v234
    %v495 = vunpack.c.l.b16 %v235
    %v496 = vunpack.c.l.b16 %v236
    %v497 = vunpack.c.l.b16 %v237
    %v498 = vunpack.c.l.b16 %v238
    %v499 = vunpack.c.l.b16 %v239
    %v500 = vunpack.c.l.b16 %v240
    %v501 = vunpack.c.l.b16 %v241
    %v502 = vunpack.c.l.b16 %v242
    %v503 = vunpack.c.l.b16 %v243
    %v504 = vunpack.c.l.b16 %v244
    %v505 = vunpack.c.l.b16 %v245
    %v506 = vunpack.c.l.b16 %v246
    %v507 = vunpack.c.l.b16 %v247
    %v508 = vunpack.c.l.b16 %v248
    %v509 = vunpack.c.l.b16 %v249
    %v510 = vunpack.c.l.b16 %v250
    %v511 = vunpack.c.l.b16 %v251
    %v512 = vunpack.c.l.b16 %v252
    %v513 = vunpack.c.l.b16 %v253
    %v514 = vunpack.c.l.b16 %v254
    %v515 = vunpack.c.l.b16 %v255
    %v516 = vunpack.c.l.b16 %v256
    %v517 = vunpack.c.l.b16 %v257
    %v518 = vunpack.c.l.b16 %v258
    %v519 = vunpack.c.l.b16 %v259
    %v520 = vpack.c.b16 %v393, %v392
    %v521 = vpack.c.b16 %v395, %v394
    %v522 = vpack.c.b16 %v397, %v396
    %v523 = vpack.c.b16 %v399, %v398
    %v524 = vpack.c.b16 %v401, %v400
    %v525 = vpack.c.b16 %v403, %v402
    %v526 = vpack.c.b16 %v405, %v404
    %v527 = vpack.c.b16 %v407, %v406
    %v528 = vpack.c.b16 %v409, %v408
    %v529 = vpack.c.b16 %v411, %v410
    %v530 = vpack.c.b16 %v413, %v412
    %v531 = vpack.c.b16 %v415, %v414
    %v532 = vpack.c.b16 %v417, %v416
    %v533 = vpack.c.b16 %v419, %v418
    %v534 = vpack.c.b16 %v421, %v420
    %v535 = vpack.c.b16 %v423, %v422
    %v536 = vpack.c.b16 %v425, %v424
    %v537 = vpack.c.b16 %v427, %v426
    %v538 = vpack.c.b16 %v429, %v428
    %v539 = vpack.c.b16 %v431, %v430
    %v540 = vpack.c.b16 %v433, %v432
    %v541 = vpack.c.b16 %v435, %v434
    %v542 = vpack.c.b16 %v437, %v436
    %v543 = vpack.c.b16 %v439, %v438
    %v544 = vpack.c.b16 %v441, %v440
    %v545 = vpack.c.b16 %v443, %v442
    %v546 = vpack.c.b16 %v445, %v444
    %v547 = vpack.c.b16 %v447, %v446
    %v548 = vpack.c.b16 %v449, %v448
    %v549 = vpack.c.b16 %v451, %v450
    %v550 = vpack.c.b16 %v453, %v452
    %v551 = vpack.c.b16 %v455, %v454
    %v552 = vpack.c.b16 %v457, %v456
    %v553 = vpack.c.b16 %v459, %v458
    %v554 = vpack.c.b16 %v461, %v460
    %v555 = vpack.c.b16 %v463, %v462
    %v556 = vpack.c.b16 %v465, %v464
    %v557 = vpack.c.b16 %v467, %v466
    %v558 = vpack.c.b16 %v469, %v468
    %v559 = vpack.c.b16 %v471, %v470
    %v560 = vpack.c.b16 %v473, %v472
    %v561 = vpack.c.b16 %v475, %v474
    %v562 = vpack.c.b16 %v477, %v476
    %v563 = vpack.c.b16 %v479, %v478
    %v564 = vpack.c.b16 %v481, %v480
    %v565 = vpack.c.b16 %v483, %v482
    %v566 = vpack.c.b16 %v485, %v484
    %v567 = vpack.c.b16 %v487, %v486
    %v568 = vpack.c.b16 %v489, %v488
    %v569 = vpack.c.b16 %v491, %v490
    %v570 = vpack.c.b16 %v493, %v492
    %v571 = vpack.c.b16 %v495, %v494
    %v572 = vpack.c.b16 %v497, %v496
    %v573 = vpack.c.b16 %v499, %v498
    %v574 = vpack.c.b16 %v501, %v500
    %v575 = vpack.c.b16 %v503, %v502
    %v576 = vpack.c.b16 %v505, %v504
    %v577 = vpack.c.b16 %v507, %v506
    %v578 = vpack.c.b16 %v509, %v508
    %v579 = vpack.c.b16 %v511, %v510
    %v580 = vpack.c.b16 %v513, %v512
    %v581 = vpack.c.b16 %v515, %v514
    %v582 = vpack.c.b16 %v517, %v516
    %v583 = vpack.c.b16 %v519, %v518
    %648 = vmatprep.subr.bf16.mxu0 0
    %649 = vmatpush1.bf16.msra.mxu0 %v520
    %650 = vmatprep.subr.bf16.mxu0 0
    %651 = vmatpush1.bf16.msra.mxu0 %v521
    %652 = vmatprep.subr.bf16.mxu0 0
    %653 = vmatpush1.bf16.msra.mxu0 %v522
    %654 = vmatprep.subr.bf16.mxu0 0
    %655 = vmatpush1.bf16.msra.mxu0 %v523
    %656 = vmatprep.subr.bf16.mxu0 0
    %657 = vmatpush1.bf16.msra.mxu0 %v524
    %658 = vmatprep.subr.bf16.mxu0 0
    %659 = vmatpush1.bf16.msra.mxu0 %v525
    %660 = vmatprep.subr.bf16.mxu0 0
    %661 = vmatpush1.bf16.msra.mxu0 %v526
    %662 = vmatprep.subr.bf16.mxu0 0
    %663 = vmatpush1.bf16.msra.mxu0 %v527
    %664 = vmatprep.subr.bf16.mxu0 0
    %665 = vmatpush1.bf16.msra.mxu0 %v528
    %666 = vmatprep.subr.bf16.mxu0 0
    %667 = vmatpush1.bf16.msra.mxu0 %v529
    %668 = vmatprep.subr.bf16.mxu0 0
    %669 = vmatpush1.bf16.msra.mxu0 %v530
    %670 = vmatprep.subr.bf16.mxu0 0
    %671 = vmatpush1.bf16.msra.mxu0 %v531
    %672 = vmatprep.subr.bf16.mxu0 0
    %673 = vmatpush1.bf16.msra.mxu0 %v532
    %674 = vmatprep.subr.bf16.mxu0 0
    %675 = vmatpush1.bf16.msra.mxu0 %v533
    %676 = vmatprep.subr.bf16.mxu0 0
    %677 = vmatpush1.bf16.msra.mxu0 %v534
    %678 = vmatprep.subr.bf16.mxu0 0
    %679 = vmatpush1.bf16.msra.mxu0 %v535
    %680 = vmatprep.mubr.bf16.mxu0 %v122
    %681 = vmatmul.mubr.bf16.gmra.mrb[0].mxu0 %v121
    %v682 = vpop.f32.mrb[0].mxu0
    %v683 = vadd.f32 %v263, %v682
    %v684 = vpop.f32.mrb[0].mxu0
    %v685 = vpop.f32.mrb[0].mxu0
    %v686 = vpop.f32.mrb[0].mxu0
    %687 = vdwg.mxu0
    %688 = vmatprep.subr.bf16.mxu0 0
    %689 = vmatpush1.bf16.msra.mxu0 %v536
    %690 = vmatprep.subr.bf16.mxu0 0
    %691 = vmatpush1.bf16.msra.mxu0 %v537
    %692 = vmatprep.subr.bf16.mxu0 0
    %693 = vmatpush1.bf16.msra.mxu0 %v538
    %694 = vmatprep.subr.bf16.mxu0 0
    %695 = vmatpush1.bf16.msra.mxu0 %v539
    %696 = vmatprep.subr.bf16.mxu0 0
    %697 = vmatpush1.bf16.msra.mxu0 %v540
    %698 = vmatprep.subr.bf16.mxu0 0
    %699 = vmatpush1.bf16.msra.mxu0 %v541
    %700 = vmatprep.subr.bf16.mxu0 0
    %701 = vmatpush1.bf16.msra.mxu0 %v542
    %702 = vmatprep.subr.bf16.mxu0 0
    %703 = vmatpush1.bf16.msra.mxu0 %v543
    %704 = vmatprep.subr.bf16.mxu0 0
    %705 = vmatpush1.bf16.msra.mxu0 %v544
    %706 = vmatprep.subr.bf16.mxu0 0
    %707 = vmatpush1.bf16.msra.mxu0 %v545
    %708 = vmatprep.subr.bf16.mxu0 0
    %709 = vmatpush1.bf16.msra.mxu0 %v546
    %710 = vmatprep.subr.bf16.mxu0 0
    %711 = vmatpush1.bf16.msra.mxu0 %v547
    %712 = vmatprep.subr.bf16.mxu0 0
    %713 = vmatpush1.bf16.msra.mxu0 %v548
    %714 = vmatprep.subr.bf16.mxu0 0
    %715 = vmatpush1.bf16.msra.mxu0 %v549
    %716 = vmatprep.subr.bf16.mxu0 0
    %717 = vmatpush1.bf16.msra.mxu0 %v550
    %718 = vmatprep.subr.bf16.mxu0 0
    %719 = vmatpush1.bf16.msra.mxu0 %v551
    %720 = vmatprep.mubr.bf16.mxu0 %v124
    %721 = vmatmul.mubr.bf16.gmra.mrb[0].mxu0 %v123
    %v722 = vpop.f32.mrb[0].mxu0
    %v723 = vadd.f32 %v683, %v722
    %v724 = vpop.f32.mrb[0].mxu0
    %v725 = vpop.f32.mrb[0].mxu0
    %v726 = vpop.f32.mrb[0].mxu0
    %727 = vdwg.mxu0
    %728 = vmatprep.subr.bf16.mxu0 0
    %729 = vmatpush1.bf16.msra.mxu0 %v552
    %730 = vmatprep.subr.bf16.mxu0 0
    %731 = vmatpush1.bf16.msra.mxu0 %v553
    %732 = vmatprep.subr.bf16.mxu0 0
    %733 = vmatpush1.bf16.msra.mxu0 %v554
    %734 = vmatprep.subr.bf16.mxu0 0
    %735 = vmatpush1.bf16.msra.mxu0 %v555
    %736 = vmatprep.subr.bf16.mxu0 0
    %737 = vmatpush1.bf16.msra.mxu0 %v556
    %738 = vmatprep.subr.bf16.mxu0 0
    %739 = vmatpush1.bf16.msra.mxu0 %v557
    %740 = vmatprep.subr.bf16.mxu0 0
    %741 = vmatpush1.bf16.msra.mxu0 %v558
    %742 = vmatprep.subr.bf16.mxu0 0
    %743 = vmatpush1.bf16.msra.mxu0 %v559
    %744 = vmatprep.subr.bf16.mxu0 0
    %745 = vmatpush1.bf16.msra.mxu0 %v560
    %746 = vmatprep.subr.bf16.mxu0 0
    %747 = vmatpush1.bf16.msra.mxu0 %v561
    %748 = vmatprep.subr.bf16.mxu0 0
    %749 = vmatpush1.bf16.msra.mxu0 %v562
    %750 = vmatprep.subr.bf16.mxu0 0
    %751 = vmatpush1.bf16.msra.mxu0 %v563
    %752 = vmatprep.subr.bf16.mxu0 0
    %753 = vmatpush1.bf16.msra.mxu0 %v564
    %754 = vmatprep.subr.bf16.mxu0 0
    %755 = vmatpush1.bf16.msra.mxu0 %v565
    %756 = vmatprep.subr.bf16.mxu0 0
    %757 = vmatpush1.bf16.msra.mxu0 %v566
    %758 = vmatprep.subr.bf16.mxu0 0
    %759 = vmatpush1.bf16.msra.mxu0 %v567
    %760 = vmatprep.mubr.bf16.mxu0 %v126
    %761 = vmatmul.mubr.bf16.gmra.mrb[0].mxu0 %v125
    %v762 = vpop.f32.mrb[0].mxu0
    %v763 = vadd.f32 %v723, %v762
    %v764 = vpop.f32.mrb[0].mxu0
    %v765 = vpop.f32.mrb[0].mxu0
    %v766 = vpop.f32.mrb[0].mxu0
    %767 = vdwg.mxu0
    %768 = vmatprep.subr.bf16.mxu0 0
    %769 = vmatpush1.bf16.msra.mxu0 %v568
    %770 = vmatprep.subr.bf16.mxu0 0
    %771 = vmatpush1.bf16.msra.mxu0 %v569
    %772 = vmatprep.subr.bf16.mxu0 0
    %773 = vmatpush1.bf16.msra.mxu0 %v570
    %774 = vmatprep.subr.bf16.mxu0 0
    %775 = vmatpush1.bf16.msra.mxu0 %v571
    %776 = vmatprep.subr.bf16.mxu0 0
    %777 = vmatpush1.bf16.msra.mxu0 %v572
    %778 = vmatprep.subr.bf16.mxu0 0
    %779 = vmatpush1.bf16.msra.mxu0 %v573
    %780 = vmatprep.subr.bf16.mxu0 0
    %781 = vmatpush1.bf16.msra.mxu0 %v574
    %782 = vmatprep.subr.bf16.mxu0 0
    %783 = vmatpush1.bf16.msra.mxu0 %v575
    %784 = vmatprep.subr.bf16.mxu0 0
    %785 = vmatpush1.bf16.msra.mxu0 %v576
    %786 = vmatprep.subr.bf16.mxu0 0
    %787 = vmatpush1.bf16.msra.mxu0 %v577
    %788 = vmatprep.subr.bf16.mxu0 0
    %789 = vmatpush1.bf16.msra.mxu0 %v578
    %790 = vmatprep.subr.bf16.mxu0 0
    %791 = vmatpush1.bf16.msra.mxu0 %v579
    %792 = vmatprep.subr.bf16.mxu0 0
    %793 = vmatpush1.bf16.msra.mxu0 %v580
    %794 = vmatprep.subr.bf16.mxu0 0
    %795 = vmatpush1.bf16.msra.mxu0 %v581
    %796 = vmatprep.subr.bf16.mxu0 0
    %797 = vmatpush1.bf16.msra.mxu0 %v582
    %798 = vmatprep.subr.bf16.mxu0 0
    %799 = vmatpush1.bf16.msra.mxu0 %v583
    %800 = vmatprep.mubr.bf16.mxu0 %v128
    %801 = vmatmul.mubr.bf16.gmra.mrb[0].mxu0 %v127
    %v802 = vpop.f32.mrb[0].mxu0
    %v803 = vadd.f32 %v763, %v802
    %v804 = vpop.f32.mrb[0].mxu0
    %v805 = vpop.f32.mrb[0].mxu0
    %v806 = vpop.f32.mrb[0].mxu0
    %807 = vdwg.mxu0
    %v808 = vmax.f32 %v803, 0.0
    %v809 = vpack.c.bf16 %v808, %v808
    %v810 = vld [vmem:[#allocation7] sm:$0xf]
    %v811 = vld [vmem:[#allocation7 + $0x4] sm:$0xf]
    %v812 = vld [vmem:[#allocation7 + $0x8] sm:$0xf]
    %v813 = vld [vmem:[#allocation7 + $0xc] sm:$0xf]
    %v814 = vld [vmem:[#allocation7 + $0x10] sm:$0xf]
    %v815 = vld [vmem:[#allocation7 + $0x14] sm:$0xf]
    %v816 = vld [vmem:[#allocation7 + $0x18] sm:$0xf]
    %v817 = vld [vmem:[#allocation7 + $0x1c] sm:$0xf]
    %v818 = vld [vmem:[#allocation7 + $0x20] sm:$0xf]
    %v819 = vld [vmem:[#allocation7 + $0x24] sm:$0xf]
    %v820 = vld [vmem:[#allocation7 + $0x28] sm:$0xf]
    %v821 = vld [vmem:[#allocation7 + $0x2c] sm:$0xf]
    %v822 = vld [vmem:[#allocation7 + $0x30] sm:$0xf]
    %v823 = vld [vmem:[#allocation7 + $0x34] sm:$0xf]
    %v824 = vld [vmem:[#allocation7 + $0x38] sm:$0xf]
    %v825 = vld [vmem:[#allocation7 + $0x3c] sm:$0xf]
    %v826 = vlaneseq
    %v827 = vshrl.u32 %v826, 7
    %v828 = vsub.s32 0, %v827
    %v829 = vrot.slane %v130, %v828
    %v846 = vunpack.c.l.b16 %v810
    %v847 = vunpack.c.l.b16 %v811
    %v848 = vunpack.c.l.b16 %v812
    %v849 = vunpack.c.l.b16 %v813
    %v850 = vunpack.c.l.b16 %v814
    %v851 = vunpack.c.l.b16 %v815
    %v852 = vunpack.c.l.b16 %v816
    %v853 = vunpack.c.l.b16 %v817
    %v854 = vunpack.c.l.b16 %v818
    %v855 = vunpack.c.l.b16 %v819
    %v856 = vunpack.c.l.b16 %v820
    %v857 = vunpack.c.l.b16 %v821
    %v858 = vunpack.c.l.b16 %v822
    %v859 = vunpack.c.l.b16 %v823
    %v860 = vunpack.c.l.b16 %v824
    %v861 = vunpack.c.l.b16 %v825
    %v862 = vpack.c.b16 %v847, %v846
    %v863 = vpack.c.b16 %v849, %v848
    %v864 = vpack.c.b16 %v851, %v850
    %v865 = vpack.c.b16 %v853, %v852
    %v866 = vpack.c.b16 %v855, %v854
    %v867 = vpack.c.b16 %v857, %v856
    %v868 = vpack.c.b16 %v859, %v858
    %v869 = vpack.c.b16 %v861, %v860
    %878 = vmatprep.subr.bf16.mxu0 0
    %879 = vmatpush1.bf16.msra.mxu0 %v862
    %880 = vmatprep.subr.bf16.mxu0 0
    %881 = vmatpush1.bf16.msra.mxu0 %v863
    %882 = vmatprep.subr.bf16.mxu0 0
    %883 = vmatpush1.bf16.msra.mxu0 %v864
    %884 = vmatprep.subr.bf16.mxu0 0
    %885 = vmatpush1.bf16.msra.mxu0 %v865
    %886 = vmatprep.subr.bf16.mxu0 0
    %887 = vmatpush1.bf16.msra.mxu0 %v866
    %888 = vmatprep.subr.bf16.mxu0 0
    %889 = vmatpush1.bf16.msra.mxu0 %v867
    %890 = vmatprep.subr.bf16.mxu0 0
    %891 = vmatpush1.bf16.msra.mxu0 %v868
    %892 = vmatprep.subr.bf16.mxu0 0
    %893 = vmatpush1.bf16.msra.mxu0 %v869
    %894 = vmatprep.subr.bf16.mxu0 0
    %895 = vmatpush1.bf16.msra.mxu0 0
    %896 = vmatprep.subr.bf16.mxu0 0
    %897 = vmatpush1.bf16.msra.mxu0 0
    %898 = vmatprep.subr.bf16.mxu0 0
    %899 = vmatpush1.bf16.msra.mxu0 0
    %900 = vmatprep.subr.bf16.mxu0 0
    %901 = vmatpush1.bf16.msra.mxu0 0
    %902 = vmatprep.subr.bf16.mxu0 0
    %903 = vmatpush1.bf16.msra.mxu0 0
    %904 = vmatprep.subr.bf16.mxu0 0
    %905 = vmatpush1.bf16.msra.mxu0 0
    %906 = vmatprep.subr.bf16.mxu0 0
    %907 = vmatpush1.bf16.msra.mxu0 0
    %908 = vmatprep.subr.bf16.mxu0 0
    %909 = vmatpush1.bf16.msra.mxu0 0
    %910 = vmatprep.mubr.bf16.mxu0 0
    %911 = vmatmul.mubr.bf16.gmra.mrb[0].mxu0 %v809
    %v912 = vpop.f32.mrb[0].mxu0
    %v913 = vadd.f32 %v829, %v912
    %v914 = vpop.f32.mrb[0].mxu0
    %v915 = vpop.f32.mrb[0].mxu0
    %v916 = vpop.f32.mrb[0].mxu0
    %917 = vdwg.mxu0
    %v918 = vmax.f32 %v913, 0.0
    %v919 = vpack.c.bf16 %v918, %v918
    %v920 = vld [vmem:[#allocation8] sm:$0xf]
    %v921 = vld [vmem:[#allocation8 + $0x4] sm:$0xf]
    %v922 = vld [vmem:[#allocation8 + $0x8] sm:$0xf]
    %v923 = vld [vmem:[#allocation8 + $0xc] sm:$0xf]
    %v924 = vld [vmem:[#allocation8 + $0x10] sm:$0xf]
    %v925 = vld [vmem:[#allocation8 + $0x14] sm:$0xf]
    %v926 = vld [vmem:[#allocation8 + $0x18] sm:$0xf]
    %v927 = vld [vmem:[#allocation8 + $0x1c] sm:$0xf]
    %v928 = vld [vmem:[#allocation8 + $0x20] sm:$0xf]
    %v929 = vld [vmem:[#allocation8 + $0x24] sm:$0xf]
    %v930 = vld [vmem:[#allocation8 + $0x28] sm:$0xf]
    %v931 = vld [vmem:[#allocation8 + $0x2c] sm:$0xf]
    %v932 = vld [vmem:[#allocation8 + $0x30] sm:$0xf]
    %v933 = vld [vmem:[#allocation8 + $0x34] sm:$0xf]
    %v934 = vld [vmem:[#allocation8 + $0x38] sm:$0xf]
    %v935 = vld [vmem:[#allocation8 + $0x3c] sm:$0xf]
    %v936 = vlaneseq
    %v937 = vshrl.u32 %v936, 7
    %v938 = vsub.s32 0, %v937
    %v939 = vrot.slane %v131, %v938
    %v956 = vunpack.c.l.b16 %v920
    %v957 = vunpack.c.l.b16 %v921
    %v958 = vunpack.c.l.b16 %v922
    %v959 = vunpack.c.l.b16 %v923
    %v960 = vunpack.c.l.b16 %v924
    %v961 = vunpack.c.l.b16 %v925
    %v962 = vunpack.c.l.b16 %v926
    %v963 = vunpack.c.l.b16 %v927
    %v964 = vunpack.c.l.b16 %v928
    %v965 = vunpack.c.l.b16 %v929
    %v966 = vunpack.c.l.b16 %v930
    %v967 = vunpack.c.l.b16 %v931
    %v968 = vunpack.c.l.b16 %v932
    %v969 = vunpack.c.l.b16 %v933
    %v970 = vunpack.c.l.b16 %v934
    %v971 = vunpack.c.l.b16 %v935
    %v972 = vpack.c.b16 %v957, %v956
    %v973 = vpack.c.b16 %v959, %v958
    %v974 = vpack.c.b16 %v961, %v960
    %v975 = vpack.c.b16 %v963, %v962
    %v976 = vpack.c.b16 %v965, %v964
    %v977 = vpack.c.b16 %v967, %v966
    %v978 = vpack.c.b16 %v969, %v968
    %v979 = vpack.c.b16 %v971, %v970
    %988 = vmatprep.subr.bf16.mxu0 0
    %989 = vmatpush1.bf16.msra.mxu0 %v972
    %990 = vmatprep.subr.bf16.mxu0 0
    %991 = vmatpush1.bf16.msra.mxu0 %v973
    %992 = vmatprep.subr.bf16.mxu0 0
    %993 = vmatpush1.bf16.msra.mxu0 %v974
    %994 = vmatprep.subr.bf16.mxu0 0
    %995 = vmatpush1.bf16.msra.mxu0 %v975
    %996 = vmatprep.subr.bf16.mxu0 0
    %997 = vmatpush1.bf16.msra.mxu0 %v976
    %998 = vmatprep.subr.bf16.mxu0 0
    %999 = vmatpush1.bf16.msra.mxu0 %v977
    %1000 = vmatprep.subr.bf16.mxu0 0
    %1001 = vmatpush1.bf16.msra.mxu0 %v978
    %1002 = vmatprep.subr.bf16.mxu0 0
    %1003 = vmatpush1.bf16.msra.mxu0 %v979
    %1004 = vmatprep.subr.bf16.mxu0 0
    %1005 = vmatpush1.bf16.msra.mxu0 0
    %1006 = vmatprep.subr.bf16.mxu0 0
    %1007 = vmatpush1.bf16.msra.mxu0 0
    %1008 = vmatprep.subr.bf16.mxu0 0
    %1009 = vmatpush1.bf16.msra.mxu0 0
    %1010 = vmatprep.subr.bf16.mxu0 0
    %1011 = vmatpush1.bf16.msra.mxu0 0
    %1012 = vmatprep.subr.bf16.mxu0 0
    %1013 = vmatpush1.bf16.msra.mxu0 0
    %1014 = vmatprep.subr.bf16.mxu0 0
    %1015 = vmatpush1.bf16.msra.mxu0 0
    %1016 = vmatprep.subr.bf16.mxu0 0
    %1017 = vmatpush1.bf16.msra.mxu0 0
    %1018 = vmatprep.subr.bf16.mxu0 0
    %1019 = vmatpush1.bf16.msra.mxu0 0
    %1020 = vmatprep.mubr.bf16.mxu0 0
    %1021 = vmatmul.mubr.bf16.gmra.mrb[0].mxu0 %v919
    %v1022 = vpop.f32.mrb[0].mxu0
    %v1023 = vadd.f32 %v939, %v1022
    %v1024 = vpop.f32.mrb[0].mxu0
    %v1025 = vpop.f32.mrb[0].mxu0
    %v1026 = vpop.f32.mrb[0].mxu0
    %1027 = vdwg.mxu0
    %vm1028 = vcmask 1041408
    %v1029 = vsel %vm1028, %v1023, 0.0
    %1030 = vadd.xlane.f32.xlu0 %v1029
    %v1031 = vpop.xlane.xlu0 %1030
    %v1032 = vsub.f32 %v1031, %v1023
    %v1033 = vmul.f32 %v1032, 0.125
    %v1034 = vsub.f32 %v1023, %v1033
    %1036 = vset.pattern.permute.xlu0 127
    %1037 = vperm.xlu0 %1036, %v1034
    %v1038 = vpop.permute.xlu0 %1037
    %v1040 = vadd.f32 %v1023, %v1038
    %1041 = vst [vmem:[#allocation10] sm:$0x3] %v1040
    // Predicated region
    $region38: #{tpu_custom_call.1} parent=1 // pred_check
      _
    $region39: #{tpu_custom_call.1} parent=1 // pred_check_branch
      %1043 = sbr.rel (0) target = $region41
    $region40: #{tpu_custom_call.1} parent=1 // pred_region
      %s1045 = ssub.s32 32, 32
      %1046 = vsyncadd [#allocation4], %s1045
      %s1048 = sshll.u32 [#allocation10], 4
      %s1049 = int_to_ptr.vmem [resolvable:$true] %s1048
      %1051 = dma.vmem_to_hbm [thread:$0]  %s1049, 32, %s5, [#allocation4]
    $region41: #{tpu_custom_call.1} parent=1 // pred_fallthru
      _
    // Predicated region
    $region42: #{tpu_custom_call.1} parent=1 // pred_check
      _
    $region43: #{tpu_custom_call.1} parent=1 // pred_check_branch
      %1053 = sbr.rel (0) target = $region45
    $region44: #{tpu_custom_call.1} parent=1 // pred_region
      %1054 = dma.done [#allocation4], 32
    $region45: #{tpu_custom_call.1} parent=1 // pred_fallthru
      _
    %1055 = vsyncpa [#allocation3], 1
    %1056 = vsyncpa [#allocation6], 1
    %1057 = vsyncpa [#allocation9], 1
    %1058 = vsyncpa [#allocation4], 1

</llo_original>
